<compile_context>
chip_gen: v5e
topology: v5e:2x2
jax: 0.10.0
libtpu: 0.0.40
codegen_flags: <defaults>
</compile_context>

<pallas_src>
import functools

import jax
import jax.numpy as jnp
from jax.experimental import pallas as pl
from jax.experimental.pallas import tpu as pltpu

BN_EPS = 1e-5
# BatchNorm1d in eval with default stats / affine: x -> (x - 0)/sqrt(1 + eps)
BN_SCALE = 1.0 / float((1.0 + BN_EPS) ** 0.5)


def _octonion_mul(x, y):
    """x, y: lists of 8 arrays (same shape). Returns list of 8 arrays."""
    x0, x1, x2, x3, x4, x5, x6, x7 = x
    y0, y1, y2, y3, y4, y5, y6, y7 = y
    e0 = x0 * y0 - x1 * y1 - x2 * y2 - x3 * y3 - x4 * y4 - x5 * y5 - x6 * y6 - x7 * y7
    e1 = x0 * y1 + x1 * y0 + x2 * y3 - x3 * y2 + x4 * y5 - x5 * y4 - x6 * y7 + x7 * y6
    e2 = x0 * y2 - x1 * y3 + x2 * y0 + x3 * y1 + x4 * y6 + x5 * y7 - x6 * y4 - x7 * y5
    e3 = x0 * y3 + x1 * y2 - x2 * y1 + x3 * y0 + x4 * y7 - x5 * y6 + x6 * y5 - x7 * y4
    e4 = x0 * y4 - x1 * y5 - x2 * y6 - x3 * y7 + x4 * y0 + x5 * y1 + x6 * y2 + x7 * y3
    e5 = x0 * y5 + x1 * y4 - x2 * y7 + x3 * y6 - x4 * y1 + x5 * y0 - x6 * y3 + x7 * y2
    e6 = x0 * y6 + x1 * y7 + x2 * y4 - x3 * y5 - x4 * y2 + x5 * y3 + x6 * y0 - x7 * y1
    e7 = x0 * y7 - x1 * y6 + x2 * y5 + x3 * y4 - x4 * y3 - x5 * y2 + x6 * y1 + x7 * y0
    return [e0, e1, e2, e3, e4, e5, e6, e7]


def _omult_kernel(e_ref, ent_ref, out_ref, *, ent_bn_scale):
    # e_ref:   (B, 8*D)  Hamilton product, resident in VMEM (constant index_map)
    # ent_ref: (TN, 8*D) raw entity-table tile streamed from HBM
    # out_ref: (B, TN)
    e = e_ref[...]
    w = ent_ref[...]
    # Single fused matmul, K = 8*D, contracting the LAST axis of both operands
    # (no physical transpose of the entity tile).
    acc = jax.lax.dot_general(
        e, w,
        dimension_numbers=(((1,), (1,)), ((), ())),
        preferred_element_type=jnp.float32)
    # Entity-table BatchNorm (eval) is a constant scale -> fold it here, in f32,
    # BEFORE the sigmoid:  sum_i e_i . (c*w_i)^T == c * (e . W^T)
    out_ref[...] = jax.nn.sigmoid(acc * ent_bn_scale).astype(out_ref.dtype)


def _pick_tn(num_entities, desired):
    """Largest multiple-of-128 tile <= desired that divides E (fallback E)."""
    if num_entities <= desired:
        return num_entities
    tn = (desired // 128) * 128
    while tn >= 128:
        if num_entities % tn == 0:
            return tn
        tn -= 128
    return num_entities


def omult_forward_head_batch(e_flat, ent_flat, *, tn=512):
    """e_flat: (B, 8*D); ent_flat: raw entity table (E, 8*D) -> score (B, E)."""
    B, K = e_flat.shape
    E, K2 = ent_flat.shape
    assert K == K2, "feature dims of e and entity table must match"
    tn = _pick_tn(E, tn)
    grid = (E // tn,)
    kernel = functools.partial(_omult_kernel, ent_bn_scale=BN_SCALE)
    return pl.pallas_call(
        kernel,
        out_shape=jax.ShapeDtypeStruct((B, E), jnp.float32),
        grid_spec=pltpu.PrefetchScalarGridSpec(
            num_scalar_prefetch=0,
            grid=grid,
            in_specs=[
                # e is grid-invariant -> constant index_map keeps it resident.
                pl.BlockSpec((B, K), lambda j: (0, 0)),
                # streamed entity-table tile (double-buffered by Pallas).
                pl.BlockSpec((tn, K), lambda j: (j, 0)),
            ],
            out_specs=pl.BlockSpec((B, tn), lambda j: (0, j)),
        ),
        compiler_params=pltpu.CompilerParams(
            dimension_semantics=("parallel",),
            vmem_limit_bytes=64 * 1024 * 1024),
    )(e_flat, ent_flat)


def omult_apply(ent_emb, rel_emb, h_idx, r_idx, *, embedding_dim,
                tn=512, matmul_dtype=None):
    """Embedding gather + eval-BN + Hamilton product (wrapper) + Pallas kernel.

    ent_emb: (E, 8*D) component-concatenated entity table (any float dtype;
             it is streamed raw by the kernel — no BN'd HBM copy is made).
    rel_emb: (R, 8*D) component-concatenated relation table.
    """
    D = embedding_dim
    h_idx = h_idx.reshape(-1)
    r_idx = r_idx.reshape(-1)
    head = ent_emb[h_idx].astype(jnp.float32)              # (B, 8*D)
    rel = rel_emb[r_idx].astype(jnp.float32) * BN_SCALE    # rel BN (eval)
    x = [head[:, i * D:(i + 1) * D] for i in range(8)]
    y = [rel[:, i * D:(i + 1) * D] for i in range(8)]
    # Hamilton product hoisted out of the kernel (grid-invariant, tiny B*8D).
    e_flat = jnp.concatenate(_octonion_mul(x, y), axis=1)  # (B, 8*D) f32
    if matmul_dtype is not None:
        e_flat = e_flat.astype(matmul_dtype)
    return omult_forward_head_batch(e_flat, ent_emb, tn=tn)


def omult_reference(ent_emb, rel_emb, h_idx, r_idx, *, embedding_dim):
    """Pure-JAX f32 reference mirroring the PyTorch forward_head_batch (eval)."""
    D = embedding_dim
    ent = ent_emb.astype(jnp.float32)
    rel = rel_emb.astype(jnp.float32)
    h_idx = h_idx.reshape(-1)
    r_idx = r_idx.reshape(-1)
    head = ent[h_idx]
    r = rel[r_idx] * BN_SCALE
    x = [head[:, i * D:(i + 1) * D] for i in range(8)]
    y = [r[:, i * D:(i + 1) * D] for i in range(8)]
    e = _octonion_mul(x, y)
    w = [ent[:, i * D:(i + 1) * D] * BN_SCALE for i in range(8)]
    score = sum(jnp.dot(e[i], w[i].T) for i in range(8))
    return jax.nn.sigmoid(score)


def make_params(key, num_entities, num_relations, embedding_dim):
    """Xavier-normal-ish init. Returns ent_emb (E, 8*D), rel_emb (R, 8*D)."""
    k_ent, k_rel = jax.random.split(key)
    ent_std = (2.0 / (num_entities + embedding_dim)) ** 0.5
    rel_std = (2.0 / (num_relations + embedding_dim)) ** 0.5
    ent = jax.random.normal(
        k_ent, (num_entities, 8 * embedding_dim), jnp.float32) * ent_std
    rel = jax.random.normal(
        k_rel, (num_relations, 8 * embedding_dim), jnp.float32) * rel_std
    return ent, rel


if __name__ == "__main__":
    num_entities = 1024
    num_relations = 16
    embedding_dim = 32
    batch = 8

    key = jax.random.PRNGKey(0)
    k_params, k_h, k_r = jax.random.split(key, 3)
    ent_emb, rel_emb = make_params(
        k_params, num_entities, num_relations, embedding_dim)

    h_idx = jax.random.randint(k_h, (batch,), 0, num_entities, jnp.int32)
    r_idx = jax.random.randint(k_r, (batch,), 0, num_relations, jnp.int32)

    ref = omult_reference(ent_emb, rel_emb, h_idx, r_idx,
                          embedding_dim=embedding_dim)

    # --- f32 path: exact eval-mode semantics of the PyTorch module -----------
    apply_f32 = jax.jit(functools.partial(omult_apply,
                                          embedding_dim=embedding_dim))
    out = jax.block_until_ready(apply_f32(ent_emb, rel_emb, h_idx, r_idx))
    assert out.shape == (batch, num_entities)
    assert jnp.allclose(out, ref, atol=1e-5, rtol=1e-5), "f32 mismatch vs ref"

    # --- bf16-streamed entity table (half the HBM bytes), f32 accumulation ---
    ent_bf16 = ent_emb.astype(jnp.bfloat16)        # stored once in bf16
    apply_bf16 = jax.jit(functools.partial(omult_apply,
                                           embedding_dim=embedding_dim,
                                           matmul_dtype=jnp.bfloat16))
    out_b = jax.block_until_ready(apply_bf16(ent_bf16, rel_emb, h_idx, r_idx))
    assert out_b.shape == (batch, num_entities)
    assert jnp.allclose(out_b.astype(jnp.float32), ref,
                        atol=3e-2, rtol=3e-2), "bf16 mismatch vs ref"

    print("KERNEL_OK")
</pallas_src>

<mosaic_0001>
module attributes {stable_mosaic.version = 11 : i64} {
  func.func @_omult_kernel(%arg0: i32, %arg1: memref<8x256xf32, #tpu.memory_space<vmem>>, %arg2: memref<512x256xf32, #tpu.memory_space<vmem>>, %arg3: memref<8x512xf32, #tpu.memory_space<vmem>>) attributes {dimension_semantics = [#tpu.dimension_semantics<parallel>], iteration_bounds = array<i64: 2>, scalar_prefetch = 0 : i64, scratch_operands = 0 : i64, tpu.core_type = #tpu.core_type<tc>, window_params = [{pipeline_mode = #tpu.pipeline_mode<synchronous>, transform_indices = @transform_0, window_bounds = array<i64: 8, 256>}, {transform_indices = @transform_1, window_bounds = array<i64: 512, 256>}, {transform_indices = @transform_2, window_bounds = array<i64: 8, 512>}]} {
    %c0 = arith.constant 0 : index
    %c0_0 = arith.constant 0 : index
    %0 = vector.load %arg1[%c0, %c0_0] : memref<8x256xf32, #tpu.memory_space<vmem>>, vector<8x256xf32>
    %c0_1 = arith.constant 0 : index
    %c0_2 = arith.constant 0 : index
    %1 = vector.load %arg2[%c0_1, %c0_2] : memref<512x256xf32, #tpu.memory_space<vmem>>, vector<512x256xf32>
    %cst = arith.constant dense<0.000000e+00> : vector<8x512xf32>
    %2 = tpu.matmul %0, %1, %cst {dimension_numbers = #tpu.dot_dimension_numbers<[1], [1], [0], [0], [0, 0, 1, 0], [], []>} : vector<8x256xf32>, vector<512x256xf32>, vector<8x512xf32> -> vector<8x512xf32>
    %cst_3 = arith.constant 0.999994993 : f32
    %3 = vector.broadcast %cst_3 : f32 to vector<8x512xf32>
    %4 = arith.mulf %2, %3 : vector<8x512xf32>
    %5 = arith.negf %4 : vector<8x512xf32>
    %6 = math.exp %5 : vector<8x512xf32>
    %cst_4 = arith.constant 1.000000e+00 : f32
    %7 = vector.broadcast %cst_4 : f32 to vector<8x512xf32>
    %8 = arith.addf %7, %6 : vector<8x512xf32>
    %9 = arith.divf %7, %8 : vector<8x512xf32>
    %c0_5 = arith.constant 0 : index
    %c0_6 = arith.constant 0 : index
    %10 = vector.load %arg3[%c0_5, %c0_6] : memref<8x512xf32, #tpu.memory_space<vmem>>, vector<8x512xf32>
    tpu.vector_store %arg3[%c0_5, %c0_6], %9 {strides = array<i32>} : memref<8x512xf32, #tpu.memory_space<vmem>>, vector<8x512xf32>,
    return
  }
  func.func @transform_0(%arg0: i32) -> (i32, i32) {
    %c0_i32 = arith.constant 0 : i32
    %c0_i32_0 = arith.constant 0 : i32
    %c0_i32_1 = arith.constant 0 : i32
    return %c0_i32, %c0_i32_0 : i32, i32
  }
  func.func @transform_1(%arg0: i32) -> (i32, i32) {
    %c0_i32 = arith.constant 0 : i32
    %c0_i32_0 = arith.constant 0 : i32
    return %arg0, %c0_i32 : i32, i32
  }
  func.func @transform_2(%arg0: i32) -> (i32, i32) {
    %c0_i32 = arith.constant 0 : i32
    %c0_i32_0 = arith.constant 0 : i32
    return %c0_i32, %arg0 : i32, i32
  }
}

</mosaic_0001>

<llo_original>
// kernel: omult_apply.1
$region0: #{omult_apply.1}
  #allocation0 [shape = 'u32[]', space=smem, size = 0x4, offset = 0x4, fixed_abs, tag = 'smem constant byte address 0x4 - core index']
  #allocation1 [shape = 'u32[72,128]{1,0:T(1,128)}', space=vmem, size = 0x9000, scoped, tag = 'internal scratch']
  %s0 = inlined_call_operand.vmem [shape: f32[8,256], index: 0, kind: input, shape index: {}]
  %s1 = inlined_call_operand.hbm [shape: f32[1024,256], index: 1, kind: input, shape index: {}]
  %s2 = inlined_call_operand.hbm [shape: f32[8,1024], index: 2, kind: output, shape index: {}]
  %s3 = sld [smem:[#allocation0]]
  $region45: #{omult_apply.1} parent=0
    _
  %s5 = ssub.s32 1, %s3
  %s6 = scalar_select 0, %s5, %s3
  $region1: #{omult_apply.1} parent=0
    #allocation2 [shape = 'u8[1048576]{0}', space=vmem, size = 0x100000, scoped, tag = 'input window, operand 1']
    #allocation3 [shape = 's32[2]{0}', space=sflag, size = 0x8, scoped, tag = 'scoped memory for omult_apply.1']
    #allocation4 [shape = 's32[2]{0}', space=sflag, size = 0x8, scoped, tag = 'scoped memory for omult_apply.1']
    #allocation5 [shape = 'u8[32768]{0}', space=vmem, size = 0x8000, scoped, tag = 'output window, operand 0']
    %7 = vsyncpa [#allocation3], 0
    %s8 = scalar_lea.sflag [#allocation3], 1
    %9 = vsyncpa %s8, 0
    %10 = vsyncpa [#allocation4], 0
    %s11 = scalar_lea.sflag [#allocation4], 1
    %12 = vsyncpa %s11, 0
    loop: start=0, step=1, limit=4
    $region2: #{omult_apply.1} parent=1 // loop_pre_header
      _
    $region3: #{omult_apply.1} parent=1 // loop_header
      %s14 = sphi 0, %s18
      %p15 = scmp.ge.s32.totalorder %s14, 4
      %s22 = sphi 0, %s22
      %s24 = sphi 0, %s22
      %s25 = sphi 0, %s24
      %s39 = sphi 0, %s25
      %s45 = sphi 0, %s47
      %s48 = sphi 0, %s45
      %s49 = sphi 0, %s48
      %s65 = sphi 0, %s49
      %s71 = sphi 0, %s73
      %s74 = sphi 0, %s71
      %s75 = sphi 0, %s74
      %s91 = sphi 0, %s75
    $region4: #{omult_apply.1} parent=1 // loop_header_branch
      %17 = sbr.rel (%p15) target = $region8
    $region5: #{omult_apply.1} parent=1 // loop_body
      %s19 = ssub.s32 %s14, 1
      %s20 = ssub.s32 %s14, 2
      %s21 = sadd.s32 %s14, 1
      %s23 = sadd.s32 %s22, 1
      %p26 = scmp.eq.s32.totalorder %s14, 1
      %p27 = scmp.ne.s32.totalorder %s22, %s24
      %p28 = scmp.eq.s32.totalorder %s14, 0
      %p29 = por %p27, %p28
      %p30 = scmp.ne.s32.totalorder %s22, %s24
      %p31 = scmp.eq.s32.totalorder %s19, 1
      %p32 = por %p30, %p31
      %p33 = scmp.ne.s32.totalorder %s24, %s25
      %p34 = scmp.eq.s32.totalorder %s19, 0
      %p35 = por %p33, %p34
      %p36 = scmp.ne.s32.totalorder %s24, %s25
      %p37 = scmp.eq.s32.totalorder %s20, 1
      %p38 = por %p36, %p37
      %p40 = scmp.ne.s32.totalorder %s25, %s39
      %p41 = scmp.eq.s32.totalorder %s20, 0
      %p42 = por %p40, %p41
      %s43 = ssub.s32 %s14, %s21
      %p44 = scmp.eq.s32.totalorder %s43, 0
      %s46 = sadd.s32 %s45, 1
      %s47 = scalar_select %p44, %s45, %s46
      %p50 = pneg %p44
      %p51 = scmp.eq.s32.totalorder %s14, 1
      %p52 = por %p50, %p51
      %p53 = scmp.ne.s32.totalorder %s45, %s48
      %p54 = scmp.eq.s32.totalorder %s14, 0
      %p55 = por %p53, %p54
      %p56 = scmp.ne.s32.totalorder %s45, %s48
      %p57 = scmp.eq.s32.totalorder %s19, 1
      %p58 = por %p56, %p57
      %p59 = scmp.ne.s32.totalorder %s48, %s49
      %p60 = scmp.eq.s32.totalorder %s19, 0
      %p61 = por %p59, %p60
      %p62 = scmp.ne.s32.totalorder %s48, %s49
      %p63 = scmp.eq.s32.totalorder %s20, 1
      %p64 = por %p62, %p63
      %p66 = scmp.ne.s32.totalorder %s49, %s65
      %p67 = scmp.eq.s32.totalorder %s20, 0
      %p68 = por %p66, %p67
      %s69 = ssub.s32 %s14, %s21
      %p70 = scmp.eq.s32.totalorder %s69, 0
      %s72 = sadd.s32 %s71, 1
      %s73 = scalar_select %p70, %s71, %s72
      %p76 = pneg %p70
      %p77 = scmp.eq.s32.totalorder %s14, 1
      %p78 = por %p76, %p77
      %p79 = scmp.ne.s32.totalorder %s71, %s74
      %p80 = scmp.eq.s32.totalorder %s14, 0
      %p81 = por %p79, %p80
      %p82 = scmp.ne.s32.totalorder %s71, %s74
      %p83 = scmp.eq.s32.totalorder %s19, 1
      %p84 = por %p82, %p83
      %p85 = scmp.ne.s32.totalorder %s74, %s75
      %p86 = scmp.eq.s32.totalorder %s19, 0
      %p87 = por %p85, %p86
      %p88 = scmp.ne.s32.totalorder %s74, %s75
      %p89 = scmp.eq.s32.totalorder %s20, 1
      %p90 = por %p88, %p89
      %p92 = scmp.ne.s32.totalorder %s75, %s91
      %p93 = scmp.eq.s32.totalorder %s20, 0
      %p94 = por %p92, %p93
      %p95 = scmp.le.s32.totalorder 1, %s14
      %p96 = scmp.lt.s32.totalorder %s14, 3
      %p97 = pnand %p95, %p96
      %p98 = pneg %p97
      // Predicated region
      $region9: #{omult_apply.1} parent=5 // pred_check
        _
      $region10: #{omult_apply.1} parent=5 // pred_check_branch
        %100 = sbr.rel (%p97) target = $region12
      $region11: #{omult_apply.1} parent=5 // pred_region
        %s101 = ssub.s32 %s14, 1
        // Predicated region
        $region13: #{omult_apply.1} parent=11 // pred_check
          %p102 = pneg %p35
        $region14: #{omult_apply.1} parent=11 // pred_check_branch
          %104 = sbr.rel (%p102) target = $region16
        $region15: #{omult_apply.1} parent=11 // pred_region
          _
        $region16: #{omult_apply.1} parent=11 // pred_fallthru
          _
      $region12: #{omult_apply.1} parent=5 // pred_fallthru
        _
      %p105 = scmp.lt.s32.totalorder %s14, 2
      // Predicated region
      $region17: #{omult_apply.1} parent=5 // pred_check
        %p106 = pneg %p105
      $region18: #{omult_apply.1} parent=5 // pred_check_branch
        %108 = sbr.rel (%p106) target = $region20
      $region19: #{omult_apply.1} parent=5 // pred_region
        // Predicated region
        $region21: #{omult_apply.1} parent=19 // pred_check
          %p109 = pneg %p55
        $region22: #{omult_apply.1} parent=19 // pred_check_branch
          %111 = sbr.rel (%p109) target = $region24
        $region23: #{omult_apply.1} parent=19 // pred_region
          %s112 = sand.u32 %s45, 1
          %s113 = scalar_lea.sflag [#allocation3], %s112
          %s114 = sand.u32 %s45, 1
          %s115 = smul.addr %s114, 1024
          %s116 = scalar_lea.vmem [#allocation2], %s115
          %s117 = smul.u32 64, %s14
          %119 = vsyncadd %s113, 0
          %s120 = smul.addr %s117, 2
          %s121 = smul.addr %s120, 8
          %s122 = scalar_lea.hbm %s1, %s121
          %s123 = sshll.u32 %s122, 4
          %s124 = int_to_ptr.hbm [resolvable:$true] %s123
          %s125 = sshll.u32 %s116, 4
          %s126 = int_to_ptr.vmem [resolvable:$true] %s125
          %131 = dma.hbm_to_vmem [thread:$0]  %s124, 16384, %s126, %s113, 256, 256, 16
        $region24: #{omult_apply.1} parent=19 // pred_fallthru
          _
      $region20: #{omult_apply.1} parent=5 // pred_fallthru
        _
      %p132 = scmp.le.s32.totalorder 1, %s14
      %p133 = scmp.lt.s32.totalorder %s14, 3
      %p134 = pnand %p132, %p133
      %p135 = pneg %p134
      // Predicated region
      $region25: #{omult_apply.1} parent=5 // pred_check
        _
      $region26: #{omult_apply.1} parent=5 // pred_check_branch
        %137 = sbr.rel (%p134) target = $region28
      $region27: #{omult_apply.1} parent=5 // pred_region
        %s138 = ssub.s32 %s14, 1
        %s139 = sand.u32 %s48, 1
        %s140 = scalar_lea.sflag [#allocation3], %s139
        %s141 = sand.u32 %s48, 1
        %s142 = smul.addr %s141, 1024
        %s143 = scalar_lea.vmem [#allocation2], %s142
        // Predicated region
        $region29: #{omult_apply.1} parent=27 // pred_check
          %p144 = pneg %p61
        $region30: #{omult_apply.1} parent=27 // pred_check_branch
          %146 = sbr.rel (%p144) target = $region32
        $region31: #{omult_apply.1} parent=27 // pred_region
          %148 = dma.done %s140, 16384
        $region32: #{omult_apply.1} parent=27 // pred_fallthru
          _
        %p149 = pneg %p35
        %p150 = pneg %p32
        %s151 = sand.u32 %s48, 1
        %s152 = scalar_lea.sflag [#allocation3], %s151
        %s153 = sand.u32 %s48, 1
        %s154 = smul.addr %s153, 1024
        %s155 = scalar_lea.vmem [#allocation2], %s154
        %p156 = pneg %p61
        %p157 = pneg %p58
        %p158 = pneg %p87
        %p159 = pneg %p84
        %s160 = sand.u32 %s74, 1
        %s161 = scalar_lea.sflag [#allocation4], %s160
        %s162 = sand.u32 %s74, 1
        %s163 = smul.addr %s162, 32
        %s164 = scalar_lea.vmem [#allocation5], %s163
        %s165 = smul.u32 64, %s19
        %s166 = smul.u32 4, %s19
        %v167 = vld [vmem:[%s0] sm:$0xff]
        %v168 = vld [vmem:[%s0 + $0x8] sm:$0xff]
        %v169 = vld [vmem:[%s143] sm:$0xff]
        %v170 = vld [vmem:[%s143 + $0x8] sm:$0xff]
        %v171 = vld [vmem:[%s143 + $0x10] sm:$0xff]
        %v172 = vld [vmem:[%s143 + $0x18] sm:$0xff]
        %v173 = vld [vmem:[%s143 + $0x20] sm:$0xff]
        %v174 = vld [vmem:[%s143 + $0x28] sm:$0xff]
        %v175 = vld [vmem:[%s143 + $0x30] sm:$0xff]
        %v176 = vld [vmem:[%s143 + $0x38] sm:$0xff]
        %v177 = vld [vmem:[%s143 + $0x40] sm:$0xff]
        %v178 = vld [vmem:[%s143 + $0x48] sm:$0xff]
        %v179 = vld [vmem:[%s143 + $0x50] sm:$0xff]
        %v180 = vld [vmem:[%s143 + $0x58] sm:$0xff]
        %v181 = vld [vmem:[%s143 + $0x60] sm:$0xff]
        %v182 = vld [vmem:[%s143 + $0x68] sm:$0xff]
        %v183 = vld [vmem:[%s143 + $0x70] sm:$0xff]
        %v184 = vld [vmem:[%s143 + $0x78] sm:$0xff]
        %v185 = vld [vmem:[%s143 + $0x80] sm:$0xff]
        %v186 = vld [vmem:[%s143 + $0x88] sm:$0xff]
        %v187 = vld [vmem:[%s143 + $0x90] sm:$0xff]
        %v188 = vld [vmem:[%s143 + $0x98] sm:$0xff]
        %v189 = vld [vmem:[%s143 + $0xa0] sm:$0xff]
        %v190 = vld [vmem:[%s143 + $0xa8] sm:$0xff]
        %v191 = vld [vmem:[%s143 + $0xb0] sm:$0xff]
        %v192 = vld [vmem:[%s143 + $0xb8] sm:$0xff]
        %v193 = vld [vmem:[%s143 + $0xc0] sm:$0xff]
        %v194 = vld [vmem:[%s143 + $0xc8] sm:$0xff]
        %v195 = vld [vmem:[%s143 + $0xd0] sm:$0xff]
        %v196 = vld [vmem:[%s143 + $0xd8] sm:$0xff]
        %v197 = vld [vmem:[%s143 + $0xe0] sm:$0xff]
        %v198 = vld [vmem:[%s143 + $0xe8] sm:$0xff]
        %v199 = vld [vmem:[%s143 + $0xf0] sm:$0xff]
        %v200 = vld [vmem:[%s143 + $0xf8] sm:$0xff]
        %v201 = vld [vmem:[%s143 + $0x100] sm:$0xff]
        %v202 = vld [vmem:[%s143 + $0x108] sm:$0xff]
        %v203 = vld [vmem:[%s143 + $0x110] sm:$0xff]
        %v204 = vld [vmem:[%s143 + $0x118] sm:$0xff]
        %v205 = vld [vmem:[%s143 + $0x120] sm:$0xff]
        %v206 = vld [vmem:[%s143 + $0x128] sm:$0xff]
        %v207 = vld [vmem:[%s143 + $0x130] sm:$0xff]
        %v208 = vld [vmem:[%s143 + $0x138] sm:$0xff]
        %v209 = vld [vmem:[%s143 + $0x140] sm:$0xff]
        %v210 = vld [vmem:[%s143 + $0x148] sm:$0xff]
        %v211 = vld [vmem:[%s143 + $0x150] sm:$0xff]
        %v212 = vld [vmem:[%s143 + $0x158] sm:$0xff]
        %v213 = vld [vmem:[%s143 + $0x160] sm:$0xff]
        %v214 = vld [vmem:[%s143 + $0x168] sm:$0xff]
        %v215 = vld [vmem:[%s143 + $0x170] sm:$0xff]
        %v216 = vld [vmem:[%s143 + $0x178] sm:$0xff]
        %v217 = vld [vmem:[%s143 + $0x180] sm:$0xff]
        %v218 = vld [vmem:[%s143 + $0x188] sm:$0xff]
        %v219 = vld [vmem:[%s143 + $0x190] sm:$0xff]
        %v220 = vld [vmem:[%s143 + $0x198] sm:$0xff]
        %v221 = vld [vmem:[%s143 + $0x1a0] sm:$0xff]
        %v222 = vld [vmem:[%s143 + $0x1a8] sm:$0xff]
        %v223 = vld [vmem:[%s143 + $0x1b0] sm:$0xff]
        %v224 = vld [vmem:[%s143 + $0x1b8] sm:$0xff]
        %v225 = vld [vmem:[%s143 + $0x1c0] sm:$0xff]
        %v226 = vld [vmem:[%s143 + $0x1c8] sm:$0xff]
        %v227 = vld [vmem:[%s143 + $0x1d0] sm:$0xff]
        %v228 = vld [vmem:[%s143 + $0x1d8] sm:$0xff]
        %v229 = vld [vmem:[%s143 + $0x1e0] sm:$0xff]
        %v230 = vld [vmem:[%s143 + $0x1e8] sm:$0xff]
        %v231 = vld [vmem:[%s143 + $0x1f0] sm:$0xff]
        %v232 = vld [vmem:[%s143 + $0x1f8] sm:$0xff]
        %v233 = vld [vmem:[%s143 + $0x200] sm:$0xff]
        %v234 = vld [vmem:[%s143 + $0x208] sm:$0xff]
        %v235 = vld [vmem:[%s143 + $0x210] sm:$0xff]
        %v236 = vld [vmem:[%s143 + $0x218] sm:$0xff]
        %v237 = vld [vmem:[%s143 + $0x220] sm:$0xff]
        %v238 = vld [vmem:[%s143 + $0x228] sm:$0xff]
        %v239 = vld [vmem:[%s143 + $0x230] sm:$0xff]
        %v240 = vld [vmem:[%s143 + $0x238] sm:$0xff]
        %v241 = vld [vmem:[%s143 + $0x240] sm:$0xff]
        %v242 = vld [vmem:[%s143 + $0x248] sm:$0xff]
        %v243 = vld [vmem:[%s143 + $0x250] sm:$0xff]
        %v244 = vld [vmem:[%s143 + $0x258] sm:$0xff]
        %v245 = vld [vmem:[%s143 + $0x260] sm:$0xff]
        %v246 = vld [vmem:[%s143 + $0x268] sm:$0xff]
        %v247 = vld [vmem:[%s143 + $0x270] sm:$0xff]
        %v248 = vld [vmem:[%s143 + $0x278] sm:$0xff]
        %v249 = vld [vmem:[%s143 + $0x280] sm:$0xff]
        %v250 = vld [vmem:[%s143 + $0x288] sm:$0xff]
        %v251 = vld [vmem:[%s143 + $0x290] sm:$0xff]
        %v252 = vld [vmem:[%s143 + $0x298] sm:$0xff]
        %v253 = vld [vmem:[%s143 + $0x2a0] sm:$0xff]
        %v254 = vld [vmem:[%s143 + $0x2a8] sm:$0xff]
        %v255 = vld [vmem:[%s143 + $0x2b0] sm:$0xff]
        %v256 = vld [vmem:[%s143 + $0x2b8] sm:$0xff]
        %v257 = vld [vmem:[%s143 + $0x2c0] sm:$0xff]
        %v258 = vld [vmem:[%s143 + $0x2c8] sm:$0xff]
        %v259 = vld [vmem:[%s143 + $0x2d0] sm:$0xff]
        %v260 = vld [vmem:[%s143 + $0x2d8] sm:$0xff]
        %v261 = vld [vmem:[%s143 + $0x2e0] sm:$0xff]
        %v262 = vld [vmem:[%s143 + $0x2e8] sm:$0xff]
        %v263 = vld [vmem:[%s143 + $0x2f0] sm:$0xff]
        %v264 = vld [vmem:[%s143 + $0x2f8] sm:$0xff]
        %v265 = vld [vmem:[%s143 + $0x300] sm:$0xff]
        %v266 = vld [vmem:[%s143 + $0x308] sm:$0xff]
        %v267 = vld [vmem:[%s143 + $0x310] sm:$0xff]
        %v268 = vld [vmem:[%s143 + $0x318] sm:$0xff]
        %v269 = vld [vmem:[%s143 + $0x320] sm:$0xff]
        %v270 = vld [vmem:[%s143 + $0x328] sm:$0xff]
        %v271 = vld [vmem:[%s143 + $0x330] sm:$0xff]
        %v272 = vld [vmem:[%s143 + $0x338] sm:$0xff]
        %v273 = vld [vmem:[%s143 + $0x340] sm:$0xff]
        %v274 = vld [vmem:[%s143 + $0x348] sm:$0xff]
        %v275 = vld [vmem:[%s143 + $0x350] sm:$0xff]
        %v276 = vld [vmem:[%s143 + $0x358] sm:$0xff]
        %v277 = vld [vmem:[%s143 + $0x360] sm:$0xff]
        %v278 = vld [vmem:[%s143 + $0x368] sm:$0xff]
        %v279 = vld [vmem:[%s143 + $0x370] sm:$0xff]
        %v280 = vld [vmem:[%s143 + $0x378] sm:$0xff]
        %v281 = vld [vmem:[%s143 + $0x380] sm:$0xff]
        %v282 = vld [vmem:[%s143 + $0x388] sm:$0xff]
        %v283 = vld [vmem:[%s143 + $0x390] sm:$0xff]
        %v284 = vld [vmem:[%s143 + $0x398] sm:$0xff]
        %v285 = vld [vmem:[%s143 + $0x3a0] sm:$0xff]
        %v286 = vld [vmem:[%s143 + $0x3a8] sm:$0xff]
        %v287 = vld [vmem:[%s143 + $0x3b0] sm:$0xff]
        %v288 = vld [vmem:[%s143 + $0x3b8] sm:$0xff]
        %v289 = vld [vmem:[%s143 + $0x3c0] sm:$0xff]
        %v290 = vld [vmem:[%s143 + $0x3c8] sm:$0xff]
        %v291 = vld [vmem:[%s143 + $0x3d0] sm:$0xff]
        %v292 = vld [vmem:[%s143 + $0x3d8] sm:$0xff]
        %v293 = vld [vmem:[%s143 + $0x3e0] sm:$0xff]
        %v294 = vld [vmem:[%s143 + $0x3e8] sm:$0xff]
        %v295 = vld [vmem:[%s143 + $0x3f0] sm:$0xff]
        %v296 = vld [vmem:[%s143 + $0x3f8] sm:$0xff]
        %297 = vmatpush.xpose.msra.mxu0 %v199
        %298 = vmatpush.xpose.msra.mxu0 %v197
        %299 = vmatpush.xpose.msra.mxu0 %v195
        %300 = vmatpush.xpose.msra.mxu0 %v193
        %301 = vmatpush.xpose.msra.mxu0 %v191
        %302 = vmatpush.xpose.msra.mxu0 %v189
        %303 = vmatpush.xpose.msra.mxu0 %v187
        %304 = vmatpush.xpose.msra.mxu0 %v185
        %305 = vmatpush.xpose.msra.mxu0 %v183
        %306 = vmatpush.xpose.msra.mxu0 %v181
        %307 = vmatpush.xpose.msra.mxu0 %v179
        %308 = vmatpush.xpose.msra.mxu0 %v177
        %309 = vmatpush.xpose.msra.mxu0 %v175
        %310 = vmatpush.xpose.msra.mxu0 %v173
        %311 = vmatpush.xpose.msra.mxu0 %v171
        %312 = vmatpush.xpose.msra.mxu0 %v169
        %313 = vmatmul.f32.gmra.mxu0 %v167
        %v314 = vpop.f32.mrf.mxu0
        %v315 = vadd.f32 0.0, %v314
        %316 = vdwg.mxu0
        %317 = vmatpush.xpose.msra.mxu0 %v200
        %318 = vmatpush.xpose.msra.mxu0 %v198
        %319 = vmatpush.xpose.msra.mxu0 %v196
        %320 = vmatpush.xpose.msra.mxu0 %v194
        %321 = vmatpush.xpose.msra.mxu0 %v192
        %322 = vmatpush.xpose.msra.mxu0 %v190
        %323 = vmatpush.xpose.msra.mxu0 %v188
        %324 = vmatpush.xpose.msra.mxu0 %v186
        %325 = vmatpush.xpose.msra.mxu0 %v184
        %326 = vmatpush.xpose.msra.mxu0 %v182
        %327 = vmatpush.xpose.msra.mxu0 %v180
        %328 = vmatpush.xpose.msra.mxu0 %v178
        %329 = vmatpush.xpose.msra.mxu0 %v176
        %330 = vmatpush.xpose.msra.mxu0 %v174
        %331 = vmatpush.xpose.msra.mxu0 %v172
        %332 = vmatpush.xpose.msra.mxu0 %v170
        %333 = vmatmul.f32.gmra.mxu0 %v168
        %v334 = vpop.f32.mrf.mxu0
        %v335 = vadd.f32 %v315, %v334
        %336 = vdwg.mxu0
        %337 = vmatpush.xpose.msra.mxu0 %v231
        %338 = vmatpush.xpose.msra.mxu0 %v229
        %339 = vmatpush.xpose.msra.mxu0 %v227
        %340 = vmatpush.xpose.msra.mxu0 %v225
        %341 = vmatpush.xpose.msra.mxu0 %v223
        %342 = vmatpush.xpose.msra.mxu0 %v221
        %343 = vmatpush.xpose.msra.mxu0 %v219
        %344 = vmatpush.xpose.msra.mxu0 %v217
        %345 = vmatpush.xpose.msra.mxu0 %v215
        %346 = vmatpush.xpose.msra.mxu0 %v213
        %347 = vmatpush.xpose.msra.mxu0 %v211
        %348 = vmatpush.xpose.msra.mxu0 %v209
        %349 = vmatpush.xpose.msra.mxu0 %v207
        %350 = vmatpush.xpose.msra.mxu0 %v205
        %351 = vmatpush.xpose.msra.mxu0 %v203
        %352 = vmatpush.xpose.msra.mxu0 %v201
        %353 = vmatmul.f32.gmra.mxu0 %v167
        %v354 = vpop.f32.mrf.mxu0
        %v355 = vadd.f32 0.0, %v354
        %356 = vdwg.mxu0
        %357 = vmatpush.xpose.msra.mxu0 %v232
        %358 = vmatpush.xpose.msra.mxu0 %v230
        %359 = vmatpush.xpose.msra.mxu0 %v228
        %360 = vmatpush.xpose.msra.mxu0 %v226
        %361 = vmatpush.xpose.msra.mxu0 %v224
        %362 = vmatpush.xpose.msra.mxu0 %v222
        %363 = vmatpush.xpose.msra.mxu0 %v220
        %364 = vmatpush.xpose.msra.mxu0 %v218
        %365 = vmatpush.xpose.msra.mxu0 %v216
        %366 = vmatpush.xpose.msra.mxu0 %v214
        %367 = vmatpush.xpose.msra.mxu0 %v212
        %368 = vmatpush.xpose.msra.mxu0 %v210
        %369 = vmatpush.xpose.msra.mxu0 %v208
        %370 = vmatpush.xpose.msra.mxu0 %v206
        %371 = vmatpush.xpose.msra.mxu0 %v204
        %372 = vmatpush.xpose.msra.mxu0 %v202
        %373 = vmatmul.f32.gmra.mxu0 %v168
        %v374 = vpop.f32.mrf.mxu0
        %v375 = vadd.f32 %v355, %v374
        %376 = vdwg.mxu0
        %377 = vmatpush.xpose.msra.mxu0 %v263
        %378 = vmatpush.xpose.msra.mxu0 %v261
        %379 = vmatpush.xpose.msra.mxu0 %v259
        %380 = vmatpush.xpose.msra.mxu0 %v257
        %381 = vmatpush.xpose.msra.mxu0 %v255
        %382 = vmatpush.xpose.msra.mxu0 %v253
        %383 = vmatpush.xpose.msra.mxu0 %v251
        %384 = vmatpush.xpose.msra.mxu0 %v249
        %385 = vmatpush.xpose.msra.mxu0 %v247
        %386 = vmatpush.xpose.msra.mxu0 %v245
        %387 = vmatpush.xpose.msra.mxu0 %v243
        %388 = vmatpush.xpose.msra.mxu0 %v241
        %389 = vmatpush.xpose.msra.mxu0 %v239
        %390 = vmatpush.xpose.msra.mxu0 %v237
        %391 = vmatpush.xpose.msra.mxu0 %v235
        %392 = vmatpush.xpose.msra.mxu0 %v233
        %393 = vmatmul.f32.gmra.mxu0 %v167
        %v394 = vpop.f32.mrf.mxu0
        %v395 = vadd.f32 0.0, %v394
        %396 = vdwg.mxu0
        %397 = vmatpush.xpose.msra.mxu0 %v264
        %398 = vmatpush.xpose.msra.mxu0 %v262
        %399 = vmatpush.xpose.msra.mxu0 %v260
        %400 = vmatpush.xpose.msra.mxu0 %v258
        %401 = vmatpush.xpose.msra.mxu0 %v256
        %402 = vmatpush.xpose.msra.mxu0 %v254
        %403 = vmatpush.xpose.msra.mxu0 %v252
        %404 = vmatpush.xpose.msra.mxu0 %v250
        %405 = vmatpush.xpose.msra.mxu0 %v248
        %406 = vmatpush.xpose.msra.mxu0 %v246
        %407 = vmatpush.xpose.msra.mxu0 %v244
        %408 = vmatpush.xpose.msra.mxu0 %v242
        %409 = vmatpush.xpose.msra.mxu0 %v240
        %410 = vmatpush.xpose.msra.mxu0 %v238
        %411 = vmatpush.xpose.msra.mxu0 %v236
        %412 = vmatpush.xpose.msra.mxu0 %v234
        %413 = vmatmul.f32.gmra.mxu0 %v168
        %v414 = vpop.f32.mrf.mxu0
        %v415 = vadd.f32 %v395, %v414
        %416 = vdwg.mxu0
        %417 = vmatpush.xpose.msra.mxu0 %v295
        %418 = vmatpush.xpose.msra.mxu0 %v293
        %419 = vmatpush.xpose.msra.mxu0 %v291
        %420 = vmatpush.xpose.msra.mxu0 %v289
        %421 = vmatpush.xpose.msra.mxu0 %v287
        %422 = vmatpush.xpose.msra.mxu0 %v285
        %423 = vmatpush.xpose.msra.mxu0 %v283
        %424 = vmatpush.xpose.msra.mxu0 %v281
        %425 = vmatpush.xpose.msra.mxu0 %v279
        %426 = vmatpush.xpose.msra.mxu0 %v277
        %427 = vmatpush.xpose.msra.mxu0 %v275
        %428 = vmatpush.xpose.msra.mxu0 %v273
        %429 = vmatpush.xpose.msra.mxu0 %v271
        %430 = vmatpush.xpose.msra.mxu0 %v269
        %431 = vmatpush.xpose.msra.mxu0 %v267
        %432 = vmatpush.xpose.msra.mxu0 %v265
        %433 = vmatmul.f32.gmra.mxu0 %v167
        %v434 = vpop.f32.mrf.mxu0
        %v435 = vadd.f32 0.0, %v434
        %436 = vdwg.mxu0
        %437 = vmatpush.xpose.msra.mxu0 %v296
        %438 = vmatpush.xpose.msra.mxu0 %v294
        %439 = vmatpush.xpose.msra.mxu0 %v292
        %440 = vmatpush.xpose.msra.mxu0 %v290
        %441 = vmatpush.xpose.msra.mxu0 %v288
        %442 = vmatpush.xpose.msra.mxu0 %v286
        %443 = vmatpush.xpose.msra.mxu0 %v284
        %444 = vmatpush.xpose.msra.mxu0 %v282
        %445 = vmatpush.xpose.msra.mxu0 %v280
        %446 = vmatpush.xpose.msra.mxu0 %v278
        %447 = vmatpush.xpose.msra.mxu0 %v276
        %448 = vmatpush.xpose.msra.mxu0 %v274
        %449 = vmatpush.xpose.msra.mxu0 %v272
        %450 = vmatpush.xpose.msra.mxu0 %v270
        %451 = vmatpush.xpose.msra.mxu0 %v268
        %452 = vmatpush.xpose.msra.mxu0 %v266
        %453 = vmatmul.f32.gmra.mxu0 %v168
        %v454 = vpop.f32.mrf.mxu0
        %v455 = vadd.f32 %v435, %v454
        %456 = vdwg.mxu0
        %v457 = vmul.f32 %v335, 0.999995
        %v458 = vmul.f32 %v375, 0.999995
        %v459 = vmul.f32 %v415, 0.999995
        %v460 = vmul.f32 %v455, 0.999995
        %v461 = vxor.u32 %v457, 2147483648
        %v462 = vxor.u32 %v458, 2147483648
        %v463 = vxor.u32 %v459, 2147483648
        %v464 = vxor.u32 %v460, 2147483648
        %v465 = vmul.f32 %v461, 1.442695
        %v466 = vpow.pop %v465
        %v467 = vmul.f32 %v462, 1.442695
        %v468 = vpow.pop %v467
        %v469 = vmul.f32 %v463, 1.442695
        %v470 = vpow.pop %v469
        %v471 = vmul.f32 %v464, 1.442695
        %v472 = vpow.pop %v471
        %v473 = vadd.f32 %v466, 1.0
        %v474 = vadd.f32 %v468, 1.0
        %v475 = vadd.f32 %v470, 1.0
        %v476 = vadd.f32 %v472, 1.0
        %v477 = vrcp.pop %v473
        %v478 = vmul.f32 %v473, %v477
        %v479 = vsub.f32 1.0, %v478
        %v480 = vmul.f32 %v477, %v479
        %v481 = vadd.f32 %v477, %v480
        %vm482 = vweird.f32 %v473
        %vm483 = vweird.f32 %v477
        %vm484 = vmor %vm482, %vm483
        %v485 = vsel %vm484, %v477, %v481
        %v486 = vand.u32 2147483647, %v473
        %vm487 = vcmp.eq.f32.partialorder %v486, 8.507059e+37
        %v488 = vand.u32 %v473, 2147483648
        %v489 = vor.u32 1.1754944e-38, %v488
        %v490 = vsel %vm487, %v489, %v485
        %v491 = vmul.f32 1.0, %v490
        %v492 = vrcp.pop %v474
        %v493 = vmul.f32 %v474, %v492
        %v494 = vsub.f32 1.0, %v493
        %v495 = vmul.f32 %v492, %v494
        %v496 = vadd.f32 %v492, %v495
        %vm497 = vweird.f32 %v474
        %vm498 = vweird.f32 %v492
        %vm499 = vmor %vm497, %vm498
        %v500 = vsel %vm499, %v492, %v496
        %v501 = vand.u32 2147483647, %v474
        %vm502 = vcmp.eq.f32.partialorder %v501, 8.507059e+37
        %v503 = vand.u32 %v474, 2147483648
        %v504 = vor.u32 1.1754944e-38, %v503
        %v505 = vsel %vm502, %v504, %v500
        %v506 = vmul.f32 1.0, %v505
        %v507 = vrcp.pop %v475
        %v508 = vmul.f32 %v475, %v507
        %v509 = vsub.f32 1.0, %v508
        %v510 = vmul.f32 %v507, %v509
        %v511 = vadd.f32 %v507, %v510
        %vm512 = vweird.f32 %v475
        %vm513 = vweird.f32 %v507
        %vm514 = vmor %vm512, %vm513
        %v515 = vsel %vm514, %v507, %v511
        %v516 = vand.u32 2147483647, %v475
        %vm517 = vcmp.eq.f32.partialorder %v516, 8.507059e+37
        %v518 = vand.u32 %v475, 2147483648
        %v519 = vor.u32 1.1754944e-38, %v518
        %v520 = vsel %vm517, %v519, %v515
        %v521 = vmul.f32 1.0, %v520
        %v522 = vrcp.pop %v476
        %v523 = vmul.f32 %v476, %v522
        %v524 = vsub.f32 1.0, %v523
        %v525 = vmul.f32 %v522, %v524
        %v526 = vadd.f32 %v522, %v525
        %vm527 = vweird.f32 %v476
        %vm528 = vweird.f32 %v522
        %vm529 = vmor %vm527, %vm528
        %v530 = vsel %vm529, %v522, %v526
        %v531 = vand.u32 2147483647, %v476
        %vm532 = vcmp.eq.f32.partialorder %v531, 8.507059e+37
        %v533 = vand.u32 %v476, 2147483648
        %v534 = vor.u32 1.1754944e-38, %v533
        %v535 = vsel %vm532, %v534, %v530
        %v536 = vmul.f32 1.0, %v535
        %537 = vst [vmem:[%s164] sm:$0xff] %v491
        %538 = vst [vmem:[%s164 + $0x8] sm:$0xff] %v506
        %539 = vst [vmem:[%s164 + $0x10] sm:$0xff] %v521
        %540 = vst [vmem:[%s164 + $0x18] sm:$0xff] %v536
        %s541 = sand.u32 %s74, 1
        %s542 = scalar_lea.sflag [#allocation4], %s541
        %s543 = sand.u32 %s74, 1
        %s544 = smul.addr %s543, 32
        %s545 = scalar_lea.vmem [#allocation5], %s544
        // Predicated region
        $region33: #{omult_apply.1} parent=27 // pred_check
          %p546 = pneg %p84
        $region34: #{omult_apply.1} parent=27 // pred_check_branch
          %548 = sbr.rel (%p546) target = $region36
        $region35: #{omult_apply.1} parent=27 // pred_region
          %s549 = smul.u32 4, %s19
          %551 = vsyncadd %s542, 0
          %s552 = smul.addr %s549, 8
          %s553 = scalar_lea.hbm %s2, %s552
          %s555 = sshll.u32 %s545, 4
          %s556 = int_to_ptr.vmem [resolvable:$true] %s555
          %s557 = sshll.u32 %s553, 4
          %s558 = int_to_ptr.hbm [resolvable:$true] %s557
          %560 = dma.vmem_to_hbm [thread:$0]  %s556, 512, %s558, %s542
        $region36: #{omult_apply.1} parent=27 // pred_fallthru
          _
      $region28: #{omult_apply.1} parent=5 // pred_fallthru
        _
      %p561 = scmp.le.s32.totalorder 2, %s14
      // Predicated region
      $region37: #{omult_apply.1} parent=5 // pred_check
        %p562 = pneg %p561
      $region38: #{omult_apply.1} parent=5 // pred_check_branch
        %564 = sbr.rel (%p562) target = $region40
      $region39: #{omult_apply.1} parent=5 // pred_region
        %s565 = ssub.s32 %s14, 2
        // Predicated region
        $region41: #{omult_apply.1} parent=39 // pred_check
          %p566 = pneg %p90
        $region42: #{omult_apply.1} parent=39 // pred_check_branch
          %568 = sbr.rel (%p566) target = $region44
        $region43: #{omult_apply.1} parent=39 // pred_region
          %s569 = sand.u32 %s75, 1
          %s570 = scalar_lea.sflag [#allocation4], %s569
          %s571 = sand.u32 %s75, 1
          %s572 = smul.addr %s571, 32
          %s573 = scalar_lea.vmem [#allocation5], %s572
          %575 = dma.done %s570, 512
        $region44: #{omult_apply.1} parent=39 // pred_fallthru
          _
      $region40: #{omult_apply.1} parent=5 // pred_fallthru
        _
    $region6: #{omult_apply.1} parent=1 // loop_footer
      %s18 = sadd.s32 1, %s14
    $region7: #{omult_apply.1} parent=1 // loop_footer_branch
      %13 = sbr.rel target = $region3
    $region8: #{omult_apply.1} parent=1 // loop_exit
      _
    %576 = vsyncpa [#allocation3], 1
    %s577 = scalar_lea.sflag [#allocation3], 1
    %578 = vsyncpa %s577, 1
    %579 = vsyncpa [#allocation4], 1
    %s580 = scalar_lea.sflag [#allocation4], 1
    %581 = vsyncpa %s580, 1

</llo_original>
